<compile_context>
chip_gen: v7x
topology: tpu7x:2x2x1
jax: 0.10.0
libtpu: 0.0.40
codegen_flags: <defaults>
</compile_context>

<pallas_src>
import jax
import jax.numpy as jnp
from jax import lax
from jax.experimental import pallas as pl
from jax.experimental.pallas import tpu as pltpu

EPS = 1e-5  # BatchNorm1d default eps


# ----------------------------------------------------------------------------
# Kernel
# ----------------------------------------------------------------------------
def make_mlp_kernel(num_hidden, hid, out_c, compute_dtype):
    """Kernel closed over static layer count / channel sizes / matmul dtype."""
    L = num_hidden

    def kernel(*refs):
        # refs layout:
        #   [0] x tile            (tn, in_c)            compute_dtype
        #   [1] W0                (hid, in_c)           compute_dtype
        #   [2] b0                (hid, 1)              f32
        #   if L >= 2:
        #   [3] stacked weights   (L-1, hid+out_c, hid) compute_dtype
        #   [4] stacked biases    (L-1, hid+out_c, 1)   f32
        #   [-3] folded last W_last chunk (out_c, hid)  compute_dtype
        #   [-2] folded final bias        (out_c, 1)    f32
        #   [-1] output tile              (out_c, tn)
        x_ref, w0_ref, b0_ref = refs[0], refs[1], refs[2]
        if L >= 2:
            s_ref, sb_ref = refs[3], refs[4]
            wl_ref, bl_ref, out_ref = refs[5], refs[6], refs[7]
        else:
            wl_ref, bl_ref, out_ref = refs[3], refs[4], refs[5]

        # First hidden Linear: W0 @ x^T.  Contract in_c of both operands so the
        # batch transpose happens in VMEM, not as a wrapper HBM pass.
        z = lax.dot_general(
            w0_ref[...], x_ref[...],
            dimension_numbers=(((1,), (1,)), ((), ())),
            preferred_element_type=jnp.float32) + b0_ref[...]
        h = jnp.maximum(z, 0.0)                              # (hid, tn) f32

        # Final bias (BN shifts already folded in host-side).
        acc = jnp.broadcast_to(bl_ref[...], out_ref.shape).astype(jnp.float32)

        for l in range(L - 1):
            # One stacked dot per layer: rows [0, hid) = folded next hidden
            # Linear, rows [hid, hid+out_c) = folded W_last column chunk.
            y = jnp.dot(s_ref[l], h.astype(compute_dtype),
                        preferred_element_type=jnp.float32) + sb_ref[l]
            acc = acc + y[hid:hid + out_c, :]
            h = jnp.maximum(y[:hid, :], 0.0)

        # Last hidden layer only feeds the final Linear.
        acc = acc + jnp.dot(wl_ref[...], h.astype(compute_dtype),
                            preferred_element_type=jnp.float32)
        out_ref[...] = acc.astype(out_ref.dtype)

    return kernel


# ----------------------------------------------------------------------------
# Host-side BatchNorm folding (eval mode, relu_last=False ordering) + stacking
# ----------------------------------------------------------------------------
def fold_params(hidden_params, w_last, b_last):
    """hidden_params: list of (W [hid, in_f], b [hid], gamma, beta, mean, var)
    in PyTorch layout.  w_last: [out_c, L*hid], b_last: [out_c].

    h_l = scale_l * relu(z_l) + shift_l (eval BN after ReLU), so the affine is
    absorbed into every consumer of h_l: the next hidden Linear and the matching
    column chunk of the final Linear.  The two consumers of each r_l are then
    row-concatenated into one matrix so the kernel does a single dot per layer."""
    L = len(hidden_params)
    hid = hidden_params[0][0].shape[0]
    out_c = w_last.shape[0]

    scales, shifts = [], []
    for (_, _, g, be, m, v) in hidden_params:
        s = g * jax.lax.rsqrt(v + EPS)
        scales.append(s)
        shifts.append(be - m * s)

    # First hidden layer is unfolded (nothing precedes it).
    W0, b0 = hidden_params[0][0], hidden_params[0][1]

    # Final-layer column chunks, folded with the BN affine of the layer they read.
    wl_chunks = []
    bl = b_last
    for l in range(L):
        chunk = w_last[:, l * hid:(l + 1) * hid]
        wl_chunks.append(chunk * scales[l][None, :])
        bl = bl + chunk @ shifts[l]

    # Stacked per-layer consumer matrices: [ folded W_{l+1} ; folded wl_l ].
    stacked_Ws, stacked_bs = [], []
    for l in range(L - 1):
        W_next, b_next = hidden_params[l + 1][0], hidden_params[l + 1][1]
        Wf = W_next * scales[l][None, :]
        bf = b_next + W_next @ shifts[l]
        stacked_Ws.append(jnp.concatenate([Wf, wl_chunks[l]], axis=0))
        stacked_bs.append(jnp.concatenate([bf, jnp.zeros((out_c,), bf.dtype)]))

    if L >= 2:
        s_stack = jnp.stack(stacked_Ws)                  # (L-1, hid+out_c, hid)
        sb_stack = jnp.stack(stacked_bs)[:, :, None]     # (L-1, hid+out_c, 1) f32
    else:
        s_stack, sb_stack = None, None

    return W0, b0[:, None], s_stack, sb_stack, wl_chunks[L - 1], bl[:, None]


# ----------------------------------------------------------------------------
# Chip-aware tuning + param-spec helper
# ----------------------------------------------------------------------------
def _chip_tuning():
    """Returns (min_grid_steps, vmem_limit_bytes) tuned per TPU generation."""
    min_steps, vmem_limit = 2, 32 * 1024 * 1024          # conservative fallback
    try:
        cap = int(getattr(pltpu.get_tpu_info(), "vmem_capacity_bytes", 0) or 0)
    except Exception:
        cap = 0
    if cap >= (100 << 20):
        # v5e / v6e: 128 MiB VMEM, 1 TensorCore -> big tiles, generous limit.
        min_steps, vmem_limit = 1, 96 * 1024 * 1024
    elif cap > 0:
        # v7x-class: ~64 MiB VMEM per core, 2 TensorCores -> keep >=4 grid steps
        # so each core gets >=2 steps of DMA/compute overlap; ~75% of capacity.
        min_steps = 4
        vmem_limit = max(32 * 1024 * 1024, (cap * 3) // 4)
    return min_steps, vmem_limit


def _const_spec(shape, index_map):
    """BlockSpec for a parameter revisited with the same block index every step:
    single-buffer it (double-buffering constant blocks only burns VMEM)."""
    try:
        return pl.BlockSpec(shape, index_map, pipeline_mode=pl.Buffered(1))
    except Exception:
        return pl.BlockSpec(shape, index_map)


# ----------------------------------------------------------------------------
# Wrapper
# ----------------------------------------------------------------------------
def mlp_pallas(x, hidden_params, w_last, b_last, *, tn=512,
               compute_dtype=jnp.float32):
    """x: [N, in_c].  hidden_params: list of PyTorch-layout
    (W, b, gamma, beta, running_mean, running_var).  w_last: [out_c, L*hid]."""
    N, in_c = x.shape
    L = len(hidden_params)
    hid = hidden_params[0][0].shape[0]
    out_c = w_last.shape[0]
    out_dtype = x.dtype

    W0, b0, s_stack, sb_stack, wl_last, bl = fold_params(
        hidden_params, w_last, b_last)
    W0 = W0.astype(compute_dtype)
    wl_last = wl_last.astype(compute_dtype)
    b0 = b0.astype(jnp.float32)
    bl = bl.astype(jnp.float32)
    if s_stack is not None:
        s_stack = s_stack.astype(compute_dtype)
        sb_stack = sb_stack.astype(jnp.float32)

    # --- Batch tiling: 128-aligned, as fat as the chip allows ----------------
    min_steps, vmem_limit = _chip_tuning()
    tn = max(128, (tn // 128) * 128)
    tn = min(tn, max(128, ((N // max(min_steps, 1)) // 128) * 128))
    Np = pl.cdiv(N, tn) * tn

    x_in = x.astype(compute_dtype)
    if Np != N:
        # Zero-padded batch rows are safe: output columns are independent and the
        # padded columns are sliced off below.
        x_in = jnp.pad(x_in, ((0, Np - N), (0, 0)))

    # --- Inputs & specs -------------------------------------------------------
    inputs = [x_in, W0, b0]
    in_specs = [
        pl.BlockSpec((tn, in_c), lambda j: (j, 0)),
        _const_spec(W0.shape, lambda j: (0, 0)),
        _const_spec(b0.shape, lambda j: (0, 0)),
    ]
    if L >= 2:
        inputs += [s_stack, sb_stack]
        in_specs += [
            _const_spec(s_stack.shape, lambda j: (0, 0, 0)),
            _const_spec(sb_stack.shape, lambda j: (0, 0, 0)),
        ]
    inputs += [wl_last, bl]
    in_specs += [
        _const_spec(wl_last.shape, lambda j: (0, 0)),
        _const_spec(bl.shape, lambda j: (0, 0)),
    ]
    out_spec = pl.BlockSpec((out_c, tn), lambda j: (0, j))

    # --- Advisory cost hint ---------------------------------------------------
    flops = 2 * Np * (hid * in_c + (L - 1) * hid * (hid + out_c) + out_c * hid)
    bytes_accessed = (
        x_in.size * x_in.dtype.itemsize
        + W0.size * W0.dtype.itemsize + b0.size * 4
        + (s_stack.size * s_stack.dtype.itemsize + sb_stack.size * 4 if L >= 2 else 0)
        + wl_last.size * wl_last.dtype.itemsize + bl.size * 4
        + out_c * Np * jnp.dtype(out_dtype).itemsize)
    cost = pl.CostEstimate(flops=int(flops), transcendentals=0,
                           bytes_accessed=int(bytes_accessed))

    outT = pl.pallas_call(
        make_mlp_kernel(L, hid, out_c, compute_dtype),
        out_shape=jax.ShapeDtypeStruct((out_c, Np), out_dtype),
        grid_spec=pltpu.PrefetchScalarGridSpec(
            num_scalar_prefetch=0,
            grid=(Np // tn,),
            in_specs=in_specs,
            out_specs=out_spec,
        ),
        compiler_params=pltpu.CompilerParams(
            dimension_semantics=("parallel",),
            vmem_limit_bytes=int(vmem_limit),
        ),
        cost_estimate=cost,
    )(*inputs)

    return jnp.transpose(outT[:, :N])                    # (N, out_c)


# ----------------------------------------------------------------------------
# Parameter init (PyTorch layouts) and pure-JAX reference
# ----------------------------------------------------------------------------
def init_params(key, in_c, hid_c, out_c, num_layers):
    L = num_layers - 1
    keys = iter(jax.random.split(key, 6 * L + 2))
    hidden_params = []
    fan_in = in_c
    for _ in range(L):
        bound = float(fan_in) ** -0.5
        W = jax.random.uniform(next(keys), (hid_c, fan_in), jnp.float32, -bound, bound)
        b = jax.random.uniform(next(keys), (hid_c,), jnp.float32, -bound, bound)
        g = jax.random.uniform(next(keys), (hid_c,), jnp.float32, 0.5, 1.5)    # BN gamma
        be = jax.random.uniform(next(keys), (hid_c,), jnp.float32, -0.5, 0.5)  # BN beta
        m = 0.1 * jax.random.normal(next(keys), (hid_c,), jnp.float32)          # running_mean
        v = jax.random.uniform(next(keys), (hid_c,), jnp.float32, 0.5, 1.5)     # running_var
        hidden_params.append((W, b, g, be, m, v))
        fan_in = hid_c

    cat_dim = L * hid_c
    bound = float(cat_dim) ** -0.5
    w_last = jax.random.uniform(next(keys), (out_c, cat_dim), jnp.float32, -bound, bound)
    b_last = jax.random.uniform(next(keys), (out_c,), jnp.float32, -bound, bound)
    return hidden_params, w_last, b_last


def mlp_reference(x, hidden_params, w_last, b_last):
    """Pure-JAX mirror of the PyTorch forward (eval, relu_last=False, p=0)."""
    xs = []
    h = x
    for (W, b, g, be, m, v) in hidden_params:
        h = h @ W.T + b                                    # Linear
        h = jnp.maximum(h, 0.0)                            # relu_()
        h = (h - m) * jax.lax.rsqrt(v + EPS) * g + be      # BatchNorm1d (eval)
        xs.append(h)
    cat = jnp.concatenate(xs, axis=1)
    return cat @ w_last.T + b_last


if __name__ == "__main__":
    batch, in_channels, hidden_channels, out_channels, num_layers = 512, 16, 32, 8, 3

    key = jax.random.PRNGKey(0)
    kx, kp = jax.random.split(key)
    x = jax.random.normal(kx, (batch, in_channels), jnp.float32)
    hidden_params, w_last, b_last = init_params(
        kp, in_channels, hidden_channels, out_channels, num_layers)

    ref = mlp_reference(x, hidden_params, w_last, b_last)

    # f32 matmuls: near-exact check against the PyTorch-order reference.
    out_f32 = jax.block_until_ready(
        mlp_pallas(x, hidden_params, w_last, b_last, compute_dtype=jnp.float32))
    assert out_f32.shape == (batch, out_channels)
    assert jnp.allclose(out_f32, ref, atol=1e-4, rtol=1e-4)

    # bf16 matmul operands (f32 accumulation): looser tolerance.
    out_bf16 = jax.block_until_ready(
        mlp_pallas(x, hidden_params, w_last, b_last, compute_dtype=jnp.bfloat16))
    assert out_bf16.shape == (batch, out_channels)
    assert jnp.allclose(out_bf16, ref, atol=5e-2, rtol=5e-2)

    print("KERNEL_OK")
</pallas_src>

<mosaic_0001>
module attributes {stable_mosaic.version = 11 : i64} {
  func.func @kernel(%arg0: i32, %arg1: memref<256x16xf32, #tpu.memory_space<vmem>>, %arg2: memref<32x16xf32, #tpu.memory_space<vmem>>, %arg3: memref<32x1xf32, #tpu.memory_space<vmem>>, %arg4: memref<1x40x32xf32, #tpu.memory_space<vmem>>, %arg5: memref<1x40x1xf32, #tpu.memory_space<vmem>>, %arg6: memref<8x32xf32, #tpu.memory_space<vmem>>, %arg7: memref<8x1xf32, #tpu.memory_space<vmem>>, %arg8: memref<8x256xf32, #tpu.memory_space<vmem>>) attributes {dimension_semantics = [#tpu.dimension_semantics<parallel>], iteration_bounds = array<i64: 2>, scalar_prefetch = 0 : i64, scratch_operands = 0 : i64, tpu.core_type = #tpu.core_type<tc>, window_params = [{transform_indices = @transform_0, window_bounds = array<i64: 256, 16>}, {pipeline_mode = #tpu.pipeline_mode<synchronous>, transform_indices = @transform_1, window_bounds = array<i64: 32, 16>}, {pipeline_mode = #tpu.pipeline_mode<synchronous>, transform_indices = @transform_2, window_bounds = array<i64: 32, 1>}, {pipeline_mode = #tpu.pipeline_mode<synchronous>, transform_indices = @transform_3, window_bounds = array<i64: 1, 40, 32>}, {pipeline_mode = #tpu.pipeline_mode<synchronous>, transform_indices = @transform_4, window_bounds = array<i64: 1, 40, 1>}, {pipeline_mode = #tpu.pipeline_mode<synchronous>, transform_indices = @transform_5, window_bounds = array<i64: 8, 32>}, {pipeline_mode = #tpu.pipeline_mode<synchronous>, transform_indices = @transform_6, window_bounds = array<i64: 8, 1>}, {transform_indices = @transform_7, window_bounds = array<i64: 8, 256>}]} {
    %c0 = arith.constant 0 : index
    %c0_0 = arith.constant 0 : index
    %0 = vector.load %arg2[%c0, %c0_0] : memref<32x16xf32, #tpu.memory_space<vmem>>, vector<32x16xf32>
    %c0_1 = arith.constant 0 : index
    %c0_2 = arith.constant 0 : index
    %1 = vector.load %arg1[%c0_1, %c0_2] : memref<256x16xf32, #tpu.memory_space<vmem>>, vector<256x16xf32>
    %cst = arith.constant dense<0.000000e+00> : vector<32x256xf32>
    %2 = tpu.matmul %0, %1, %cst {dimension_numbers = #tpu.dot_dimension_numbers<[1], [1], [0], [0], [0, 0, 1, 0], [], []>} : vector<32x16xf32>, vector<256x16xf32>, vector<32x256xf32> -> vector<32x256xf32>
    %c0_3 = arith.constant 0 : index
    %c0_4 = arith.constant 0 : index
    %3 = vector.load %arg3[%c0_3, %c0_4] : memref<32x1xf32, #tpu.memory_space<vmem>>, vector<32x1xf32>
    %4 = vector.broadcast %3 : vector<32x1xf32> to vector<32x256xf32>
    %5 = arith.addf %2, %4 : vector<32x256xf32>
    %cst_5 = arith.constant 0.000000e+00 : f32
    %6 = vector.broadcast %cst_5 : f32 to vector<32x256xf32>
    %7 = arith.maximumf %5, %6 : vector<32x256xf32>
    %c0_6 = arith.constant 0 : index
    %c0_7 = arith.constant 0 : index
    %8 = vector.load %arg7[%c0_6, %c0_7] : memref<8x1xf32, #tpu.memory_space<vmem>>, vector<8x1xf32>
    %9 = vector.shape_cast %8 : vector<8x1xf32> to vector<8x1xf32>
    %10 = vector.broadcast %9 : vector<8x1xf32> to vector<8x256xf32>
    %c0_8 = arith.constant 0 : index
    %c0_9 = arith.constant 0 : index
    %c0_10 = arith.constant 0 : index
    %11 = vector.load %arg4[%c0_8, %c0_9, %c0_10] : memref<1x40x32xf32, #tpu.memory_space<vmem>>, vector<1x40x32xf32>
    %12 = vector.shape_cast %11 : vector<1x40x32xf32> to vector<40x32xf32>
    %cst_11 = arith.constant dense<0.000000e+00> : vector<40x256xf32>
    %13 = tpu.matmul %12, %7, %cst_11 {dimension_numbers = #tpu.dot_dimension_numbers<[1], [0], [0], [1], [0, 0, 1, 1], [], []>} : vector<40x32xf32>, vector<32x256xf32>, vector<40x256xf32> -> vector<40x256xf32>
    %c0_12 = arith.constant 0 : index
    %c0_13 = arith.constant 0 : index
    %c0_14 = arith.constant 0 : index
    %14 = vector.load %arg5[%c0_12, %c0_13, %c0_14] : memref<1x40x1xf32, #tpu.memory_space<vmem>>, vector<1x40x1xf32>
    %15 = vector.shape_cast %14 : vector<1x40x1xf32> to vector<40x1xf32>
    %16 = vector.broadcast %15 : vector<40x1xf32> to vector<40x256xf32>
    %17 = arith.addf %13, %16 : vector<40x256xf32>
    %18 = vector.extract_strided_slice %17 {offsets = [32, 0], sizes = [8, 256], strides = [1, 1]} : vector<40x256xf32> to vector<8x256xf32>
    %19 = arith.addf %10, %18 : vector<8x256xf32>
    %20 = vector.extract_strided_slice %17 {offsets = [0, 0], sizes = [32, 256], strides = [1, 1]} : vector<40x256xf32> to vector<32x256xf32>
    %cst_15 = arith.constant 0.000000e+00 : f32
    %21 = vector.broadcast %cst_15 : f32 to vector<32x256xf32>
    %22 = arith.maximumf %20, %21 : vector<32x256xf32>
    %c0_16 = arith.constant 0 : index
    %c0_17 = arith.constant 0 : index
    %23 = vector.load %arg6[%c0_16, %c0_17] : memref<8x32xf32, #tpu.memory_space<vmem>>, vector<8x32xf32>
    %cst_18 = arith.constant dense<0.000000e+00> : vector<8x256xf32>
    %24 = tpu.matmul %23, %22, %cst_18 {dimension_numbers = #tpu.dot_dimension_numbers<[1], [0], [0], [1], [0, 0, 1, 1], [], []>} : vector<8x32xf32>, vector<32x256xf32>, vector<8x256xf32> -> vector<8x256xf32>
    %25 = arith.addf %19, %24 : vector<8x256xf32>
    %c0_19 = arith.constant 0 : index
    %c0_20 = arith.constant 0 : index
    %26 = vector.load %arg8[%c0_19, %c0_20] : memref<8x256xf32, #tpu.memory_space<vmem>>, vector<8x256xf32>
    tpu.vector_store %arg8[%c0_19, %c0_20], %25 {strides = array<i32>} : memref<8x256xf32, #tpu.memory_space<vmem>>, vector<8x256xf32>,
    return
  }
  func.func @transform_0(%arg0: i32) -> (i32, i32) {
    %c0_i32 = arith.constant 0 : i32
    %c0_i32_0 = arith.constant 0 : i32
    return %arg0, %c0_i32 : i32, i32
  }
  func.func @transform_1(%arg0: i32) -> (i32, i32) {
    %c0_i32 = arith.constant 0 : i32
    %c0_i32_0 = arith.constant 0 : i32
    %c0_i32_1 = arith.constant 0 : i32
    return %c0_i32, %c0_i32_0 : i32, i32
  }
  func.func @transform_2(%arg0: i32) -> (i32, i32) {
    %c0_i32 = arith.constant 0 : i32
    %c0_i32_0 = arith.constant 0 : i32
    %c0_i32_1 = arith.constant 0 : i32
    return %c0_i32, %c0_i32_0 : i32, i32
  }
  func.func @transform_3(%arg0: i32) -> (i32, i32, i32) {
    %c0_i32 = arith.constant 0 : i32
    %c0_i32_0 = arith.constant 0 : i32
    %c0_i32_1 = arith.constant 0 : i32
    %c0_i32_2 = arith.constant 0 : i32
    return %c0_i32, %c0_i32_0, %c0_i32_1 : i32, i32, i32
  }
  func.func @transform_4(%arg0: i32) -> (i32, i32, i32) {
    %c0_i32 = arith.constant 0 : i32
    %c0_i32_0 = arith.constant 0 : i32
    %c0_i32_1 = arith.constant 0 : i32
    %c0_i32_2 = arith.constant 0 : i32
    return %c0_i32, %c0_i32_0, %c0_i32_1 : i32, i32, i32
  }
  func.func @transform_5(%arg0: i32) -> (i32, i32) {
    %c0_i32 = arith.constant 0 : i32
    %c0_i32_0 = arith.constant 0 : i32
    %c0_i32_1 = arith.constant 0 : i32
    return %c0_i32, %c0_i32_0 : i32, i32
  }
  func.func @transform_6(%arg0: i32) -> (i32, i32) {
    %c0_i32 = arith.constant 0 : i32
    %c0_i32_0 = arith.constant 0 : i32
    %c0_i32_1 = arith.constant 0 : i32
    return %c0_i32, %c0_i32_0 : i32, i32
  }
  func.func @transform_7(%arg0: i32) -> (i32, i32) {
    %c0_i32 = arith.constant 0 : i32
    %c0_i32_0 = arith.constant 0 : i32
    return %c0_i32, %arg0 : i32, i32
  }
}

</mosaic_0001>

<llo_original>
// kernel: tpu_custom_call.1
$region0: #{tpu_custom_call.1}
  #allocation0 [shape = 'u32[]', space=smem, size = 0x4, offset = 0x4, fixed_abs, tag = 'smem constant byte address 0x4 - core index']
  #allocation1 [shape = 'u32[144,128]{1,0:T(1,128)}', space=vmem, size = 0x12000, scoped, tag = 'internal scratch']
  %s0 = inlined_call_operand.vmem [shape: f32[512,16], index: 0, kind: input, shape index: {}]
  %s1 = inlined_call_operand.vmem [shape: f32[32,16], index: 1, kind: input, shape index: {}]
  %s2 = inlined_call_operand.vmem [shape: f32[32,1], index: 2, kind: input, shape index: {}]
  %s3 = inlined_call_operand.vmem [shape: f32[1,40,32], index: 3, kind: input, shape index: {}]
  %s4 = inlined_call_operand.vmem [shape: f32[1,40,1], index: 4, kind: input, shape index: {}]
  %s5 = inlined_call_operand.vmem [shape: f32[8,32], index: 5, kind: input, shape index: {}]
  %s6 = inlined_call_operand.vmem [shape: f32[8,1], index: 6, kind: input, shape index: {}]
  %s7 = inlined_call_operand.hbm [shape: f32[8,512], index: 7, kind: output, shape index: {}]
  %s8 = sld [smem:[#allocation0]]
  $region61: #{tpu_custom_call.1} parent=0
    _
  %s10 = ssub.s32 1, %s8
  %s11 = scalar_select 0, %s10, %s8
  $region1: #{tpu_custom_call.1} parent=0
    #allocation2 [shape = 'u8[16384]{0}', space=vmem, size = 0x4000, scoped, tag = 'output window, operand 0']
    #allocation3 [shape = 's32[2]{0}', space=sflag, size = 0x8, scoped, tag = 'scoped memory for tpu_custom_call.1']
    %12 = vsyncpa [#allocation3], 0
    %s13 = scalar_lea.sflag [#allocation3], 1
    %14 = vsyncpa %s13, 0
    loop: start=0, step=1, limit=4
    $region2: #{tpu_custom_call.1} parent=1 // loop_pre_header
      _
    $region3: #{tpu_custom_call.1} parent=1 // loop_header
      %s16 = sphi 0, %s20
      %p17 = scmp.ge.s32.totalorder %s16, 4
      %s26 = sphi 0, %s28
      %s29 = sphi 0, %s26
      %s30 = sphi 0, %s29
      %s46 = sphi 0, %s30
      %s50 = sphi 0, %s50
      %s52 = sphi 0, %s50
      %s53 = sphi 0, %s52
      %s67 = sphi 0, %s53
      %s71 = sphi 0, %s71
      %s73 = sphi 0, %s71
      %s74 = sphi 0, %s73
      %s88 = sphi 0, %s74
      %s92 = sphi 0, %s92
      %s94 = sphi 0, %s92
      %s95 = sphi 0, %s94
      %s109 = sphi 0, %s95
      %s113 = sphi 0, %s113
      %s115 = sphi 0, %s113
      %s116 = sphi 0, %s115
      %s130 = sphi 0, %s116
      %s134 = sphi 0, %s134
      %s136 = sphi 0, %s134
      %s137 = sphi 0, %s136
      %s151 = sphi 0, %s137
      %s155 = sphi 0, %s155
      %s157 = sphi 0, %s155
      %s158 = sphi 0, %s157
      %s172 = sphi 0, %s158
      %s178 = sphi 0, %s180
      %s181 = sphi 0, %s178
      %s182 = sphi 0, %s181
      %s198 = sphi 0, %s182
    $region4: #{tpu_custom_call.1} parent=1 // loop_header_branch
      %19 = sbr.rel (%p17) target = $region8
    $region5: #{tpu_custom_call.1} parent=1 // loop_body
      %s21 = ssub.s32 %s16, 1
      %s22 = ssub.s32 %s16, 2
      %s23 = sadd.s32 %s16, 1
      %s24 = ssub.s32 %s16, %s23
      %p25 = scmp.eq.s32.totalorder %s24, 0
      %s27 = sadd.s32 %s26, 1
      %s28 = scalar_select %p25, %s26, %s27
      %p31 = pneg %p25
      %p32 = scmp.eq.s32.totalorder %s16, 1
      %p33 = por %p31, %p32
      %p34 = scmp.ne.s32.totalorder %s26, %s29
      %p35 = scmp.eq.s32.totalorder %s16, 0
      %p36 = por %p34, %p35
      %p37 = scmp.ne.s32.totalorder %s26, %s29
      %p38 = scmp.eq.s32.totalorder %s21, 1
      %p39 = por %p37, %p38
      %p40 = scmp.ne.s32.totalorder %s29, %s30
      %p41 = scmp.eq.s32.totalorder %s21, 0
      %p42 = por %p40, %p41
      %p43 = scmp.ne.s32.totalorder %s29, %s30
      %p44 = scmp.eq.s32.totalorder %s22, 1
      %p45 = por %p43, %p44
      %p47 = scmp.ne.s32.totalorder %s30, %s46
      %p48 = scmp.eq.s32.totalorder %s22, 0
      %p49 = por %p47, %p48
      %s51 = sadd.s32 %s50, 1
      %p54 = scmp.eq.s32.totalorder %s16, 1
      %p55 = scmp.ne.s32.totalorder %s50, %s52
      %p56 = scmp.eq.s32.totalorder %s16, 0
      %p57 = por %p55, %p56
      %p58 = scmp.ne.s32.totalorder %s50, %s52
      %p59 = scmp.eq.s32.totalorder %s21, 1
      %p60 = por %p58, %p59
      %p61 = scmp.ne.s32.totalorder %s52, %s53
      %p62 = scmp.eq.s32.totalorder %s21, 0
      %p63 = por %p61, %p62
      %p64 = scmp.ne.s32.totalorder %s52, %s53
      %p65 = scmp.eq.s32.totalorder %s22, 1
      %p66 = por %p64, %p65
      %p68 = scmp.ne.s32.totalorder %s53, %s67
      %p69 = scmp.eq.s32.totalorder %s22, 0
      %p70 = por %p68, %p69
      %s72 = sadd.s32 %s71, 1
      %p75 = scmp.eq.s32.totalorder %s16, 1
      %p76 = scmp.ne.s32.totalorder %s71, %s73
      %p77 = scmp.eq.s32.totalorder %s16, 0
      %p78 = por %p76, %p77
      %p79 = scmp.ne.s32.totalorder %s71, %s73
      %p80 = scmp.eq.s32.totalorder %s21, 1
      %p81 = por %p79, %p80
      %p82 = scmp.ne.s32.totalorder %s73, %s74
      %p83 = scmp.eq.s32.totalorder %s21, 0
      %p84 = por %p82, %p83
      %p85 = scmp.ne.s32.totalorder %s73, %s74
      %p86 = scmp.eq.s32.totalorder %s22, 1
      %p87 = por %p85, %p86
      %p89 = scmp.ne.s32.totalorder %s74, %s88
      %p90 = scmp.eq.s32.totalorder %s22, 0
      %p91 = por %p89, %p90
      %s93 = sadd.s32 %s92, 1
      %p96 = scmp.eq.s32.totalorder %s16, 1
      %p97 = scmp.ne.s32.totalorder %s92, %s94
      %p98 = scmp.eq.s32.totalorder %s16, 0
      %p99 = por %p97, %p98
      %p100 = scmp.ne.s32.totalorder %s92, %s94
      %p101 = scmp.eq.s32.totalorder %s21, 1
      %p102 = por %p100, %p101
      %p103 = scmp.ne.s32.totalorder %s94, %s95
      %p104 = scmp.eq.s32.totalorder %s21, 0
      %p105 = por %p103, %p104
      %p106 = scmp.ne.s32.totalorder %s94, %s95
      %p107 = scmp.eq.s32.totalorder %s22, 1
      %p108 = por %p106, %p107
      %p110 = scmp.ne.s32.totalorder %s95, %s109
      %p111 = scmp.eq.s32.totalorder %s22, 0
      %p112 = por %p110, %p111
      %s114 = sadd.s32 %s113, 1
      %p117 = scmp.eq.s32.totalorder %s16, 1
      %p118 = scmp.ne.s32.totalorder %s113, %s115
      %p119 = scmp.eq.s32.totalorder %s16, 0
      %p120 = por %p118, %p119
      %p121 = scmp.ne.s32.totalorder %s113, %s115
      %p122 = scmp.eq.s32.totalorder %s21, 1
      %p123 = por %p121, %p122
      %p124 = scmp.ne.s32.totalorder %s115, %s116
      %p125 = scmp.eq.s32.totalorder %s21, 0
      %p126 = por %p124, %p125
      %p127 = scmp.ne.s32.totalorder %s115, %s116
      %p128 = scmp.eq.s32.totalorder %s22, 1
      %p129 = por %p127, %p128
      %p131 = scmp.ne.s32.totalorder %s116, %s130
      %p132 = scmp.eq.s32.totalorder %s22, 0
      %p133 = por %p131, %p132
      %s135 = sadd.s32 %s134, 1
      %p138 = scmp.eq.s32.totalorder %s16, 1
      %p139 = scmp.ne.s32.totalorder %s134, %s136
      %p140 = scmp.eq.s32.totalorder %s16, 0
      %p141 = por %p139, %p140
      %p142 = scmp.ne.s32.totalorder %s134, %s136
      %p143 = scmp.eq.s32.totalorder %s21, 1
      %p144 = por %p142, %p143
      %p145 = scmp.ne.s32.totalorder %s136, %s137
      %p146 = scmp.eq.s32.totalorder %s21, 0
      %p147 = por %p145, %p146
      %p148 = scmp.ne.s32.totalorder %s136, %s137
      %p149 = scmp.eq.s32.totalorder %s22, 1
      %p150 = por %p148, %p149
      %p152 = scmp.ne.s32.totalorder %s137, %s151
      %p153 = scmp.eq.s32.totalorder %s22, 0
      %p154 = por %p152, %p153
      %s156 = sadd.s32 %s155, 1
      %p159 = scmp.eq.s32.totalorder %s16, 1
      %p160 = scmp.ne.s32.totalorder %s155, %s157
      %p161 = scmp.eq.s32.totalorder %s16, 0
      %p162 = por %p160, %p161
      %p163 = scmp.ne.s32.totalorder %s155, %s157
      %p164 = scmp.eq.s32.totalorder %s21, 1
      %p165 = por %p163, %p164
      %p166 = scmp.ne.s32.totalorder %s157, %s158
      %p167 = scmp.eq.s32.totalorder %s21, 0
      %p168 = por %p166, %p167
      %p169 = scmp.ne.s32.totalorder %s157, %s158
      %p170 = scmp.eq.s32.totalorder %s22, 1
      %p171 = por %p169, %p170
      %p173 = scmp.ne.s32.totalorder %s158, %s172
      %p174 = scmp.eq.s32.totalorder %s22, 0
      %p175 = por %p173, %p174
      %s176 = ssub.s32 %s16, %s23
      %p177 = scmp.eq.s32.totalorder %s176, 0
      %s179 = sadd.s32 %s178, 1
      %s180 = scalar_select %p177, %s178, %s179
      %p183 = pneg %p177
      %p184 = scmp.eq.s32.totalorder %s16, 1
      %p185 = por %p183, %p184
      %p186 = scmp.ne.s32.totalorder %s178, %s181
      %p187 = scmp.eq.s32.totalorder %s16, 0
      %p188 = por %p186, %p187
      %p189 = scmp.ne.s32.totalorder %s178, %s181
      %p190 = scmp.eq.s32.totalorder %s21, 1
      %p191 = por %p189, %p190
      %p192 = scmp.ne.s32.totalorder %s181, %s182
      %p193 = scmp.eq.s32.totalorder %s21, 0
      %p194 = por %p192, %p193
      %p195 = scmp.ne.s32.totalorder %s181, %s182
      %p196 = scmp.eq.s32.totalorder %s22, 1
      %p197 = por %p195, %p196
      %p199 = scmp.ne.s32.totalorder %s182, %s198
      %p200 = scmp.eq.s32.totalorder %s22, 0
      %p201 = por %p199, %p200
      %p202 = scmp.le.s32.totalorder 1, %s16
      %p203 = scmp.lt.s32.totalorder %s16, 3
      %p204 = pnand %p202, %p203
      %p205 = pneg %p204
      // Predicated region
      $region9: #{tpu_custom_call.1} parent=5 // pred_check
        _
      $region10: #{tpu_custom_call.1} parent=5 // pred_check_branch
        %207 = sbr.rel (%p204) target = $region12
      $region11: #{tpu_custom_call.1} parent=5 // pred_region
        %s208 = ssub.s32 %s16, 1
        // Predicated region
        $region13: #{tpu_custom_call.1} parent=11 // pred_check
          %p209 = pneg %p63
        $region14: #{tpu_custom_call.1} parent=11 // pred_check_branch
          %211 = sbr.rel (%p209) target = $region16
        $region15: #{tpu_custom_call.1} parent=11 // pred_region
          _
        $region16: #{tpu_custom_call.1} parent=11 // pred_fallthru
          _
        // Predicated region
        $region17: #{tpu_custom_call.1} parent=11 // pred_check
          %p212 = pneg %p84
        $region18: #{tpu_custom_call.1} parent=11 // pred_check_branch
          %214 = sbr.rel (%p212) target = $region20
        $region19: #{tpu_custom_call.1} parent=11 // pred_region
          _
        $region20: #{tpu_custom_call.1} parent=11 // pred_fallthru
          _
        // Predicated region
        $region21: #{tpu_custom_call.1} parent=11 // pred_check
          %p215 = pneg %p105
        $region22: #{tpu_custom_call.1} parent=11 // pred_check_branch
          %217 = sbr.rel (%p215) target = $region24
        $region23: #{tpu_custom_call.1} parent=11 // pred_region
          _
        $region24: #{tpu_custom_call.1} parent=11 // pred_fallthru
          _
        // Predicated region
        $region25: #{tpu_custom_call.1} parent=11 // pred_check
          %p218 = pneg %p126
        $region26: #{tpu_custom_call.1} parent=11 // pred_check_branch
          %220 = sbr.rel (%p218) target = $region28
        $region27: #{tpu_custom_call.1} parent=11 // pred_region
          _
        $region28: #{tpu_custom_call.1} parent=11 // pred_fallthru
          _
        // Predicated region
        $region29: #{tpu_custom_call.1} parent=11 // pred_check
          %p221 = pneg %p147
        $region30: #{tpu_custom_call.1} parent=11 // pred_check_branch
          %223 = sbr.rel (%p221) target = $region32
        $region31: #{tpu_custom_call.1} parent=11 // pred_region
          _
        $region32: #{tpu_custom_call.1} parent=11 // pred_fallthru
          _
        // Predicated region
        $region33: #{tpu_custom_call.1} parent=11 // pred_check
          %p224 = pneg %p168
        $region34: #{tpu_custom_call.1} parent=11 // pred_check_branch
          %226 = sbr.rel (%p224) target = $region36
        $region35: #{tpu_custom_call.1} parent=11 // pred_region
          _
        $region36: #{tpu_custom_call.1} parent=11 // pred_fallthru
          _
      $region12: #{tpu_custom_call.1} parent=5 // pred_fallthru
        _
      %p227 = scmp.lt.s32.totalorder %s16, 2
      // Predicated region
      $region37: #{tpu_custom_call.1} parent=5 // pred_check
        %p228 = pneg %p227
      $region38: #{tpu_custom_call.1} parent=5 // pred_check_branch
        %230 = sbr.rel (%p228) target = $region40
      $region39: #{tpu_custom_call.1} parent=5 // pred_region
        // Predicated region
        $region41: #{tpu_custom_call.1} parent=39 // pred_check
          %p231 = pneg %p36
        $region42: #{tpu_custom_call.1} parent=39 // pred_check_branch
          %233 = sbr.rel (%p231) target = $region44
        $region43: #{tpu_custom_call.1} parent=39 // pred_region
          %s234 = smul.u32 32, %s16
          %p235 = scmp.lt.s32.totalorder %s234, 63
          %s236 = scalar_select %p235, %s234, 63
          %s237 = smul.addr %s236, 8
          %s238 = scalar_lea.vmem %s0, %s237
          %s239 = smul.u32 32, %s16
        $region44: #{tpu_custom_call.1} parent=39 // pred_fallthru
          _
      $region40: #{tpu_custom_call.1} parent=5 // pred_fallthru
        _
      %p240 = scmp.le.s32.totalorder 1, %s16
      %p241 = scmp.lt.s32.totalorder %s16, 3
      %p242 = pnand %p240, %p241
      %p243 = pneg %p242
      // Predicated region
      $region45: #{tpu_custom_call.1} parent=5 // pred_check
        _
      $region46: #{tpu_custom_call.1} parent=5 // pred_check_branch
        %245 = sbr.rel (%p242) target = $region48
      $region47: #{tpu_custom_call.1} parent=5 // pred_region
        %s246 = ssub.s32 %s16, 1
        %s247 = smul.u32 32, %s21
        %p248 = scmp.lt.s32.totalorder %s247, 63
        %s249 = scalar_select %p248, %s247, 63
        %s250 = smul.addr %s249, 8
        %s251 = scalar_lea.vmem %s0, %s250
        %p252 = pneg %p42
        %p253 = pneg %p39
        %p254 = pneg %p63
        %p255 = pneg %p60
        %p256 = pneg %p84
        %p257 = pneg %p81
        %p258 = pneg %p105
        %p259 = pneg %p102
        %p260 = pneg %p126
        %p261 = pneg %p123
        %p262 = pneg %p147
        %p263 = pneg %p144
        %p264 = pneg %p168
        %p265 = pneg %p165
        %p266 = pneg %p194
        %p267 = pneg %p191
        %s268 = sand.u32 %s181, 1
        %s269 = scalar_lea.sflag [#allocation3], %s268
        %s270 = sand.u32 %s181, 1
        %s271 = smul.addr %s270, 16
        %s272 = scalar_lea.vmem [#allocation2], %s271
        %s273 = smul.u32 32, %s21
        %p274 = scmp.lt.s32.totalorder %s273, 63
        %s275 = scalar_select %p274, %s273, 63
        %s276 = smul.addr %s275, 8
        %s277 = scalar_lea.vmem %s0, %s276
        %s278 = smul.u32 32, %s21
        %s279 = smul.u32 2, %s21
        %v280 = vld [vmem:[%s1] sm:$0xff]
        %v281 = vld [vmem:[%s1 + $0x8] sm:$0xff]
        %v282 = vld [vmem:[%s1 + $0x10] sm:$0xff]
        %v283 = vld [vmem:[%s1 + $0x18] sm:$0xff]
        %v284 = vld [vmem:[%s277] sm:$0xff]
        %v285 = vld [vmem:[%s277 + $0x8] sm:$0xff]
        %v286 = vld [vmem:[%s277 + $0x10] sm:$0xff]
        %v287 = vld [vmem:[%s277 + $0x18] sm:$0xff]
        %v288 = vld [vmem:[%s277 + $0x20] sm:$0xff]
        %v289 = vld [vmem:[%s277 + $0x28] sm:$0xff]
        %v290 = vld [vmem:[%s277 + $0x30] sm:$0xff]
        %v291 = vld [vmem:[%s277 + $0x38] sm:$0xff]
        %v292 = vld [vmem:[%s277 + $0x40] sm:$0xff]
        %v293 = vld [vmem:[%s277 + $0x48] sm:$0xff]
        %v294 = vld [vmem:[%s277 + $0x50] sm:$0xff]
        %v295 = vld [vmem:[%s277 + $0x58] sm:$0xff]
        %v296 = vld [vmem:[%s277 + $0x60] sm:$0xff]
        %v297 = vld [vmem:[%s277 + $0x68] sm:$0xff]
        %v298 = vld [vmem:[%s277 + $0x70] sm:$0xff]
        %v299 = vld [vmem:[%s277 + $0x78] sm:$0xff]
        %v300 = vld [vmem:[%s277 + $0x80] sm:$0xff]
        %v301 = vld [vmem:[%s277 + $0x88] sm:$0xff]
        %v302 = vld [vmem:[%s277 + $0x90] sm:$0xff]
        %v303 = vld [vmem:[%s277 + $0x98] sm:$0xff]
        %v304 = vld [vmem:[%s277 + $0xa0] sm:$0xff]
        %v305 = vld [vmem:[%s277 + $0xa8] sm:$0xff]
        %v306 = vld [vmem:[%s277 + $0xb0] sm:$0xff]
        %v307 = vld [vmem:[%s277 + $0xb8] sm:$0xff]
        %v308 = vld [vmem:[%s277 + $0xc0] sm:$0xff]
        %v309 = vld [vmem:[%s277 + $0xc8] sm:$0xff]
        %v310 = vld [vmem:[%s277 + $0xd0] sm:$0xff]
        %v311 = vld [vmem:[%s277 + $0xd8] sm:$0xff]
        %v312 = vld [vmem:[%s277 + $0xe0] sm:$0xff]
        %v313 = vld [vmem:[%s277 + $0xe8] sm:$0xff]
        %v314 = vld [vmem:[%s277 + $0xf0] sm:$0xff]
        %v315 = vld [vmem:[%s277 + $0xf8] sm:$0xff]
        %v316 = vld [vmem:[%s2] sm:$0xff]
        %v317 = vld [vmem:[%s2 + $0x8] sm:$0xff]
        %v318 = vld [vmem:[%s2 + $0x10] sm:$0xff]
        %v319 = vld [vmem:[%s2 + $0x18] sm:$0xff]
        %321 = vset.pattern.permute.xlu0 0
        %322 = vperm.xlu0 %321, %v316
        %v323 = vpop.permute.xlu0 %322
        %326 = vset.pattern.permute.xlu0 0
        %327 = vperm.xlu0 %326, %v317
        %v328 = vpop.permute.xlu0 %327
        %331 = vset.pattern.permute.xlu0 0
        %332 = vperm.xlu0 %331, %v318
        %v333 = vpop.permute.xlu0 %332
        %336 = vset.pattern.permute.xlu0 0
        %337 = vperm.xlu0 %336, %v319
        %v338 = vpop.permute.xlu0 %337
        %vm340 = vcmask 130048
        %v342 = vsel %vm340, %v280, 0
        %v345 = vsel %vm340, %v281, 0
        %v348 = vsel %vm340, %v282, 0
        %v351 = vsel %vm340, %v283, 0
        %v354 = vsel %vm340, %v284, 0
        %v357 = vsel %vm340, %v285, 0
        %v360 = vsel %vm340, %v286, 0
        %v363 = vsel %vm340, %v287, 0
        %v366 = vsel %vm340, %v288, 0
        %v369 = vsel %vm340, %v289, 0
        %v372 = vsel %vm340, %v290, 0
        %v375 = vsel %vm340, %v291, 0
        %v378 = vsel %vm340, %v292, 0
        %v381 = vsel %vm340, %v293, 0
        %v384 = vsel %vm340, %v294, 0
        %v387 = vsel %vm340, %v295, 0
        %v390 = vsel %vm340, %v296, 0
        %v393 = vsel %vm340, %v297, 0
        %v396 = vsel %vm340, %v298, 0
        %v399 = vsel %vm340, %v299, 0
        %v402 = vsel %vm340, %v300, 0
        %v405 = vsel %vm340, %v301, 0
        %v408 = vsel %vm340, %v302, 0
        %v411 = vsel %vm340, %v303, 0
        %v414 = vsel %vm340, %v304, 0
        %v417 = vsel %vm340, %v305, 0
        %v420 = vsel %vm340, %v306, 0
        %v423 = vsel %vm340, %v307, 0
        %v426 = vsel %vm340, %v308, 0
        %v429 = vsel %vm340, %v309, 0
        %v432 = vsel %vm340, %v310, 0
        %v435 = vsel %vm340, %v311, 0
        %v438 = vsel %vm340, %v312, 0
        %v441 = vsel %vm340, %v313, 0
        %v444 = vsel %vm340, %v314, 0
        %v447 = vsel %vm340, %v315, 0
        %449 = vmatprep.subr.mxu0 0.0
        %450 = vmatpush1.xpose.msra.mxu0 %v354
        %451 = vmatprep.subr.mxu0 0.0
        %452 = vmatpush1.xpose.msra.mxu0 %v357
        %453 = vmatprep.subr.mxu0 0.0
        %454 = vmatpush1.xpose.msra.mxu0 %v360
        %455 = vmatprep.subr.mxu0 0.0
        %456 = vmatpush1.xpose.msra.mxu0 %v363
        %457 = vmatprep.subr.mxu0 0.0
        %458 = vmatpush1.xpose.msra.mxu0 %v366
        %459 = vmatprep.subr.mxu0 0.0
        %460 = vmatpush1.xpose.msra.mxu0 %v369
        %461 = vmatprep.subr.mxu0 0.0
        %462 = vmatpush1.xpose.msra.mxu0 %v372
        %463 = vmatprep.subr.mxu0 0.0
        %464 = vmatpush1.xpose.msra.mxu0 %v375
        %465 = vmatprep.subr.mxu0 0.0
        %466 = vmatpush1.xpose.msra.mxu0 %v378
        %467 = vmatprep.subr.mxu0 0.0
        %468 = vmatpush1.xpose.msra.mxu0 %v381
        %469 = vmatprep.subr.mxu0 0.0
        %470 = vmatpush1.xpose.msra.mxu0 %v384
        %471 = vmatprep.subr.mxu0 0.0
        %472 = vmatpush1.xpose.msra.mxu0 %v387
        %473 = vmatprep.subr.mxu0 0.0
        %474 = vmatpush1.xpose.msra.mxu0 %v390
        %475 = vmatprep.subr.mxu0 0.0
        %476 = vmatpush1.xpose.msra.mxu0 %v393
        %477 = vmatprep.subr.mxu0 0.0
        %478 = vmatpush1.xpose.msra.mxu0 %v396
        %479 = vmatprep.subr.mxu0 0.0
        %480 = vmatpush1.xpose.msra.mxu0 %v399
        %481 = vmatprep.subr.mxu0 0.0
        %482 = vmatpush1.xpose.msra.mxu0 %v402
        %483 = vmatprep.subr.mxu0 0.0
        %484 = vmatpush1.xpose.msra.mxu0 %v405
        %485 = vmatprep.subr.mxu0 0.0
        %486 = vmatpush1.xpose.msra.mxu0 %v408
        %487 = vmatprep.subr.mxu0 0.0
        %488 = vmatpush1.xpose.msra.mxu0 %v411
        %489 = vmatprep.subr.mxu0 0.0
        %490 = vmatpush1.xpose.msra.mxu0 %v414
        %491 = vmatprep.subr.mxu0 0.0
        %492 = vmatpush1.xpose.msra.mxu0 %v417
        %493 = vmatprep.subr.mxu0 0.0
        %494 = vmatpush1.xpose.msra.mxu0 %v420
        %495 = vmatprep.subr.mxu0 0.0
        %496 = vmatpush1.xpose.msra.mxu0 %v423
        %497 = vmatprep.subr.mxu0 0.0
        %498 = vmatpush1.xpose.msra.mxu0 %v426
        %499 = vmatprep.subr.mxu0 0.0
        %500 = vmatpush1.xpose.msra.mxu0 %v429
        %501 = vmatprep.subr.mxu0 0.0
        %502 = vmatpush1.xpose.msra.mxu0 %v432
        %503 = vmatprep.subr.mxu0 0.0
        %504 = vmatpush1.xpose.msra.mxu0 %v435
        %505 = vmatprep.subr.mxu0 0.0
        %506 = vmatpush1.xpose.msra.mxu0 %v438
        %507 = vmatprep.subr.mxu0 0.0
        %508 = vmatpush1.xpose.msra.mxu0 %v441
        %509 = vmatprep.subr.mxu0 0.0
        %510 = vmatpush1.xpose.msra.mxu0 %v444
        %511 = vmatprep.subr.mxu0 0.0
        %512 = vmatpush1.xpose.msra.mxu0 %v447
        %513 = vmatprep.mubr.f32.mxu0 0.0
        %514 = vmatmul.mubr.f32.gmra.mrb[0].mxu0 %v342
        %v515 = vpop.f32.mrb[0].mxu0
        %v516 = vadd.f32 %v323, %v515
        %v517 = vpop.f32.mrb[0].mxu0
        %v518 = vadd.f32 %v323, %v517
        %519 = vmatprep.mubr.f32.mxu0 0.0
        %520 = vmatmul.mubr.f32.gmra.mrb[0].mxu0 %v345
        %v521 = vpop.f32.mrb[0].mxu0
        %v522 = vadd.f32 %v328, %v521
        %v523 = vpop.f32.mrb[0].mxu0
        %v524 = vadd.f32 %v328, %v523
        %525 = vmatprep.mubr.f32.mxu0 0.0
        %526 = vmatmul.mubr.f32.gmra.mrb[0].mxu0 %v348
        %v527 = vpop.f32.mrb[0].mxu0
        %v528 = vadd.f32 %v333, %v527
        %v529 = vpop.f32.mrb[0].mxu0
        %v530 = vadd.f32 %v333, %v529
        %531 = vmatprep.mubr.f32.mxu0 0.0
        %532 = vmatmul.mubr.f32.gmra.mrb[0].mxu0 %v351
        %v533 = vpop.f32.mrb[0].mxu0
        %v534 = vadd.f32 %v338, %v533
        %v535 = vpop.f32.mrb[0].mxu0
        %v536 = vadd.f32 %v338, %v535
        %537 = vdwg.mxu0
        %v538 = vmax.f32 %v516, 0.0
        %v539 = vmax.f32 %v518, 0.0
        %v540 = vmax.f32 %v522, 0.0
        %v541 = vmax.f32 %v524, 0.0
        %v542 = vmax.f32 %v528, 0.0
        %v543 = vmax.f32 %v530, 0.0
        %v544 = vmax.f32 %v534, 0.0
        %v545 = vmax.f32 %v536, 0.0
        %v546 = vld [vmem:[%s6] sm:$0xff]
        %548 = vset.pattern.permute.xlu0 0
        %549 = vperm.xlu0 %548, %v546
        %v550 = vpop.permute.xlu0 %549
        %v552 = vld [vmem:[%s3] sm:$0xff]
        %v553 = vld [vmem:[%s3 + $0x8] sm:$0xff]
        %v554 = vld [vmem:[%s3 + $0x10] sm:$0xff]
        %v555 = vld [vmem:[%s3 + $0x18] sm:$0xff]
        %v556 = vld [vmem:[%s3 + $0x20] sm:$0xff]
        %v557 = vld [vmem:[%s4] sm:$0xff]
        %v558 = vld [vmem:[%s4 + $0x8] sm:$0xff]
        %v559 = vld [vmem:[%s4 + $0x10] sm:$0xff]
        %v560 = vld [vmem:[%s4 + $0x18] sm:$0xff]
        %v561 = vld [vmem:[%s4 + $0x20] sm:$0xff]
        %563 = vset.pattern.permute.xlu0 0
        %564 = vperm.xlu0 %563, %v557
        %v565 = vpop.permute.xlu0 %564
        %568 = vset.pattern.permute.xlu0 0
        %569 = vperm.xlu0 %568, %v558
        %v570 = vpop.permute.xlu0 %569
        %573 = vset.pattern.permute.xlu0 0
        %574 = vperm.xlu0 %573, %v559
        %v575 = vpop.permute.xlu0 %574
        %578 = vset.pattern.permute.xlu0 0
        %579 = vperm.xlu0 %578, %v560
        %v580 = vpop.permute.xlu0 %579
        %583 = vset.pattern.permute.xlu0 0
        %584 = vperm.xlu0 %583, %v561
        %v585 = vpop.permute.xlu0 %584
        %vm587 = vcmask 261120
        %v589 = vsel %vm587, %v552, 0
        %v592 = vsel %vm587, %v553, 0
        %v595 = vsel %vm587, %v554, 0
        %v598 = vsel %vm587, %v555, 0
        %v601 = vsel %vm587, %v556, 0
        %603 = vmatprep.subr.mxu0 %v539
        %604 = vmatpush1.msra.mxu0 %v538
        %605 = vmatprep.subr.mxu0 %v541
        %606 = vmatpush1.msra.mxu0 %v540
        %607 = vmatprep.subr.mxu0 %v543
        %608 = vmatpush1.msra.mxu0 %v542
        %609 = vmatprep.subr.mxu0 %v545
        %610 = vmatpush1.msra.mxu0 %v544
        %611 = vmatprep.subr.mxu0 0.0
        %612 = vmatpush1.msra.mxu0 0.0
        %613 = vmatprep.subr.mxu0 0.0
        %614 = vmatpush1.msra.mxu0 0.0
        %615 = vmatprep.subr.mxu0 0.0
        %616 = vmatpush1.msra.mxu0 0.0
        %617 = vmatprep.subr.mxu0 0.0
        %618 = vmatpush1.msra.mxu0 0.0
        %619 = vmatprep.subr.mxu0 0.0
        %620 = vmatpush1.msra.mxu0 0.0
        %621 = vmatprep.subr.mxu0 0.0
        %622 = vmatpush1.msra.mxu0 0.0
        %623 = vmatprep.subr.mxu0 0.0
        %624 = vmatpush1.msra.mxu0 0.0
        %625 = vmatprep.subr.mxu0 0.0
        %626 = vmatpush1.msra.mxu0 0.0
        %627 = vmatprep.subr.mxu0 0.0
        %628 = vmatpush1.msra.mxu0 0.0
        %629 = vmatprep.subr.mxu0 0.0
        %630 = vmatpush1.msra.mxu0 0.0
        %631 = vmatprep.subr.mxu0 0.0
        %632 = vmatpush1.msra.mxu0 0.0
        %633 = vmatprep.subr.mxu0 0.0
        %634 = vmatpush1.msra.mxu0 0.0
        %635 = vmatprep.subr.mxu0 0.0
        %636 = vmatpush1.msra.mxu0 0.0
        %637 = vmatprep.subr.mxu0 0.0
        %638 = vmatpush1.msra.mxu0 0.0
        %639 = vmatprep.subr.mxu0 0.0
        %640 = vmatpush1.msra.mxu0 0.0
        %641 = vmatprep.subr.mxu0 0.0
        %642 = vmatpush1.msra.mxu0 0.0
        %643 = vmatprep.subr.mxu0 0.0
        %644 = vmatpush1.msra.mxu0 0.0
        %645 = vmatprep.subr.mxu0 0.0
        %646 = vmatpush1.msra.mxu0 0.0
        %647 = vmatprep.subr.mxu0 0.0
        %648 = vmatpush1.msra.mxu0 0.0
        %649 = vmatprep.subr.mxu0 0.0
        %650 = vmatpush1.msra.mxu0 0.0
        %651 = vmatprep.subr.mxu0 0.0
        %652 = vmatpush1.msra.mxu0 0.0
        %653 = vmatprep.subr.mxu0 0.0
        %654 = vmatpush1.msra.mxu0 0.0
        %655 = vmatprep.subr.mxu0 0.0
        %656 = vmatpush1.msra.mxu0 0.0
        %657 = vmatprep.subr.mxu0 0.0
        %658 = vmatpush1.msra.mxu0 0.0
        %659 = vmatprep.subr.mxu0 0.0
        %660 = vmatpush1.msra.mxu0 0.0
        %661 = vmatprep.subr.mxu0 0.0
        %662 = vmatpush1.msra.mxu0 0.0
        %663 = vmatprep.subr.mxu0 0.0
        %664 = vmatpush1.msra.mxu0 0.0
        %665 = vmatprep.subr.mxu0 0.0
        %666 = vmatpush1.msra.mxu0 0.0
        %667 = vmatprep.mubr.f32.mxu0 0.0
        %668 = vmatmul.mubr.f32.gmra.mrb[0].mxu0 %v589
        %v669 = vpop.f32.mrb[0].mxu0
        %v670 = vadd.f32 %v565, %v669
        %v671 = vpop.f32.mrb[0].mxu0
        %v672 = vadd.f32 %v565, %v671
        %673 = vmatprep.mubr.f32.mxu0 0.0
        %674 = vmatmul.mubr.f32.gmra.mrb[0].mxu0 %v592
        %v675 = vpop.f32.mrb[0].mxu0
        %v676 = vadd.f32 %v570, %v675
        %v677 = vpop.f32.mrb[0].mxu0
        %v678 = vadd.f32 %v570, %v677
        %679 = vmatprep.mubr.f32.mxu0 0.0
        %680 = vmatmul.mubr.f32.gmra.mrb[0].mxu0 %v595
        %v681 = vpop.f32.mrb[0].mxu0
        %v682 = vadd.f32 %v575, %v681
        %v683 = vpop.f32.mrb[0].mxu0
        %v684 = vadd.f32 %v575, %v683
        %685 = vmatprep.mubr.f32.mxu0 0.0
        %686 = vmatmul.mubr.f32.gmra.mrb[0].mxu0 %v598
        %v687 = vpop.f32.mrb[0].mxu0
        %v688 = vadd.f32 %v580, %v687
        %v689 = vpop.f32.mrb[0].mxu0
        %v690 = vadd.f32 %v580, %v689
        %691 = vmatprep.mubr.f32.mxu0 0.0
        %692 = vmatmul.mubr.f32.gmra.mrb[0].mxu0 %v601
        %v693 = vpop.f32.mrb[0].mxu0
        %v694 = vadd.f32 %v585, %v693
        %v695 = vpop.f32.mrb[0].mxu0
        %v696 = vadd.f32 %v585, %v695
        %697 = vdwg.mxu0
        %v698 = vadd.f32 %v550, %v694
        %v699 = vadd.f32 %v550, %v696
        %v700 = vmax.f32 %v670, 0.0
        %v701 = vmax.f32 %v672, 0.0
        %v702 = vmax.f32 %v676, 0.0
        %v703 = vmax.f32 %v678, 0.0
        %v704 = vmax.f32 %v682, 0.0
        %v705 = vmax.f32 %v684, 0.0
        %v706 = vmax.f32 %v688, 0.0
        %v707 = vmax.f32 %v690, 0.0
        %v708 = vld [vmem:[%s5] sm:$0xff]
        %v710 = vsel %vm587, %v708, 0
        %712 = vmatprep.subr.mxu0 %v701
        %713 = vmatpush1.msra.mxu0 %v700
        %714 = vmatprep.subr.mxu0 %v703
        %715 = vmatpush1.msra.mxu0 %v702
        %716 = vmatprep.subr.mxu0 %v705
        %717 = vmatpush1.msra.mxu0 %v704
        %718 = vmatprep.subr.mxu0 %v707
        %719 = vmatpush1.msra.mxu0 %v706
        %720 = vmatprep.subr.mxu0 0.0
        %721 = vmatpush1.msra.mxu0 0.0
        %722 = vmatprep.subr.mxu0 0.0
        %723 = vmatpush1.msra.mxu0 0.0
        %724 = vmatprep.subr.mxu0 0.0
        %725 = vmatpush1.msra.mxu0 0.0
        %726 = vmatprep.subr.mxu0 0.0
        %727 = vmatpush1.msra.mxu0 0.0
        %728 = vmatprep.subr.mxu0 0.0
        %729 = vmatpush1.msra.mxu0 0.0
        %730 = vmatprep.subr.mxu0 0.0
        %731 = vmatpush1.msra.mxu0 0.0
        %732 = vmatprep.subr.mxu0 0.0
        %733 = vmatpush1.msra.mxu0 0.0
        %734 = vmatprep.subr.mxu0 0.0
        %735 = vmatpush1.msra.mxu0 0.0
        %736 = vmatprep.subr.mxu0 0.0
        %737 = vmatpush1.msra.mxu0 0.0
        %738 = vmatprep.subr.mxu0 0.0
        %739 = vmatpush1.msra.mxu0 0.0
        %740 = vmatprep.subr.mxu0 0.0
        %741 = vmatpush1.msra.mxu0 0.0
        %742 = vmatprep.subr.mxu0 0.0
        %743 = vmatpush1.msra.mxu0 0.0
        %744 = vmatprep.subr.mxu0 0.0
        %745 = vmatpush1.msra.mxu0 0.0
        %746 = vmatprep.subr.mxu0 0.0
        %747 = vmatpush1.msra.mxu0 0.0
        %748 = vmatprep.subr.mxu0 0.0
        %749 = vmatpush1.msra.mxu0 0.0
        %750 = vmatprep.subr.mxu0 0.0
        %751 = vmatpush1.msra.mxu0 0.0
        %752 = vmatprep.subr.mxu0 0.0
        %753 = vmatpush1.msra.mxu0 0.0
        %754 = vmatprep.subr.mxu0 0.0
        %755 = vmatpush1.msra.mxu0 0.0
        %756 = vmatprep.subr.mxu0 0.0
        %757 = vmatpush1.msra.mxu0 0.0
        %758 = vmatprep.subr.mxu0 0.0
        %759 = vmatpush1.msra.mxu0 0.0
        %760 = vmatprep.subr.mxu0 0.0
        %761 = vmatpush1.msra.mxu0 0.0
        %762 = vmatprep.subr.mxu0 0.0
        %763 = vmatpush1.msra.mxu0 0.0
        %764 = vmatprep.subr.mxu0 0.0
        %765 = vmatpush1.msra.mxu0 0.0
        %766 = vmatprep.subr.mxu0 0.0
        %767 = vmatpush1.msra.mxu0 0.0
        %768 = vmatprep.subr.mxu0 0.0
        %769 = vmatpush1.msra.mxu0 0.0
        %770 = vmatprep.subr.mxu0 0.0
        %771 = vmatpush1.msra.mxu0 0.0
        %772 = vmatprep.subr.mxu0 0.0
        %773 = vmatpush1.msra.mxu0 0.0
        %774 = vmatprep.subr.mxu0 0.0
        %775 = vmatpush1.msra.mxu0 0.0
        %776 = vmatprep.mubr.f32.mxu0 0.0
        %777 = vmatmul.mubr.f32.gmra.mrb[0].mxu0 %v710
        %v778 = vpop.f32.mrb[0].mxu0
        %v779 = vadd.f32 0.0, %v778
        %v780 = vpop.f32.mrb[0].mxu0
        %v781 = vadd.f32 0.0, %v780
        %782 = vdwg.mxu0
        %v783 = vadd.f32 %v698, %v779
        %v784 = vadd.f32 %v699, %v781
        %785 = vst [vmem:[%s272] sm:$0xff] %v783
        %786 = vst [vmem:[%s272 + $0x8] sm:$0xff] %v784
        %s787 = sand.u32 %s181, 1
        %s788 = scalar_lea.sflag [#allocation3], %s787
        %s789 = sand.u32 %s181, 1
        %s790 = smul.addr %s789, 16
        %s791 = scalar_lea.vmem [#allocation2], %s790
        // Predicated region
        $region49: #{tpu_custom_call.1} parent=47 // pred_check
          %p792 = pneg %p191
        $region50: #{tpu_custom_call.1} parent=47 // pred_check_branch
          %794 = sbr.rel (%p792) target = $region52
        $region51: #{tpu_custom_call.1} parent=47 // pred_region
          %s795 = smul.u32 2, %s21
          %s797 = ssub.s32 256, 256
          %798 = vsyncadd %s788, %s797
          %s799 = smul.addr %s795, 128
          %s800 = scalar_lea.hbm %s7, %s799
          %s802 = sshll.u32 %s791, 4
          %s803 = int_to_ptr.vmem [resolvable:$true] %s802
          %805 = dma.vmem_to_hbm [thread:$0]  %s803, 256, %s800, %s788
        $region52: #{tpu_custom_call.1} parent=47 // pred_fallthru
          _
      $region48: #{tpu_custom_call.1} parent=5 // pred_fallthru
        _
      %p806 = scmp.le.s32.totalorder 2, %s16
      // Predicated region
      $region53: #{tpu_custom_call.1} parent=5 // pred_check
        %p807 = pneg %p806
      $region54: #{tpu_custom_call.1} parent=5 // pred_check_branch
        %809 = sbr.rel (%p807) target = $region56
      $region55: #{tpu_custom_call.1} parent=5 // pred_region
        %s810 = ssub.s32 %s16, 2
        // Predicated region
        $region57: #{tpu_custom_call.1} parent=55 // pred_check
          %p811 = pneg %p197
        $region58: #{tpu_custom_call.1} parent=55 // pred_check_branch
          %813 = sbr.rel (%p811) target = $region60
        $region59: #{tpu_custom_call.1} parent=55 // pred_region
          %s814 = sand.u32 %s182, 1
          %s815 = scalar_lea.sflag [#allocation3], %s814
          %s816 = sand.u32 %s182, 1
          %s817 = smul.addr %s816, 16
          %s818 = scalar_lea.vmem [#allocation2], %s817
          %819 = dma.done %s815, 256
        $region60: #{tpu_custom_call.1} parent=55 // pred_fallthru
          _
      $region56: #{tpu_custom_call.1} parent=5 // pred_fallthru
        _
    $region6: #{tpu_custom_call.1} parent=1 // loop_footer
      %s20 = sadd.s32 1, %s16
    $region7: #{tpu_custom_call.1} parent=1 // loop_footer_branch
      %15 = sbr.rel target = $region3
    $region8: #{tpu_custom_call.1} parent=1 // loop_exit
      _
    %820 = vsyncpa [#allocation3], 1
    %s821 = scalar_lea.sflag [#allocation3], 1
    %822 = vsyncpa %s821, 1

</llo_original>
